<compile_context>
chip_gen: v6e
topology: v6e:2x2x1
jax: 0.10.0
libtpu: 0.0.40
codegen_flags: <defaults>
</compile_context>

<pallas_src>
import jax
import jax.numpy as jnp
from jax.experimental import pallas as pl
from jax.experimental.pallas import tpu as pltpu


def _round_up(v, m):
    return (v + m - 1) // m * m


def _fused_linear_kernel(x_ref, w_ref, b_ref, o_ref):
    """o = x @ W_fused + b_fused for one row tile.

    x_ref: (TN, C) f32   input feature tile (cast to w dtype on the VPU here)
    w_ref: (C, P)  bf16  fused [cls | bbox] weight, lane-padded to P (mult 128)
    b_ref: (1, P)  f32   fused bias (zero in padding lanes)
    o_ref: (TN, P) f32   fused output tile (lane-dense stores)
    """
    x = x_ref[...].astype(w_ref.dtype)
    o_ref[...] = (
        jnp.dot(x, w_ref[...], preferred_element_type=jnp.float32) + b_ref[...]
    ).astype(o_ref.dtype)


def init_box_predictor_params(key, in_channels, num_classes, class_agnostic=False):
    """Deterministic PyTorch-Linear-style init (uniform +/- 1/sqrt(in))."""
    bbox_out = 4 if class_agnostic else num_classes * 4
    k1, k2, k3, k4 = jax.random.split(key, 4)
    bound = 1.0 / jnp.sqrt(jnp.float32(in_channels))
    # Stored transposed relative to torch's (out, in) layout -> (in, out).
    w_cls = jax.random.uniform(k1, (in_channels, num_classes), jnp.float32, -bound, bound)
    b_cls = jax.random.uniform(k2, (1, num_classes), jnp.float32, -bound, bound)
    w_box = jax.random.uniform(k3, (in_channels, bbox_out), jnp.float32, -bound, bound)
    b_box = jax.random.uniform(k4, (1, bbox_out), jnp.float32, -bound, bound)
    return {"w_cls": w_cls, "b_cls": b_cls, "w_box": w_box, "b_box": b_box}


def prepack_box_predictor_params(params, compute_dtype=jnp.bfloat16):
    """One-time packing: fuse cls|bbox, lane-pad to mult of 128, cast weights.

    compute_dtype is the MXU streaming dtype.  bf16 is the default (half the
    VMEM footprint / DMA bytes, ~O(1e-2) rel. error); pass jnp.float32 for a
    bit-matching head at negligible extra cost (weights are VMEM-resident).
    """
    k = params["w_cls"].shape[1]
    b = params["w_box"].shape[1]
    w_fused = jnp.concatenate([params["w_cls"], params["w_box"]], axis=1)  # (C, K+B)
    b_fused = jnp.concatenate([params["b_cls"], params["b_box"]], axis=1)  # (1, K+B)
    p = _round_up(k + b, 128)
    if p > k + b:
        w_fused = jnp.pad(w_fused, ((0, 0), (0, p - (k + b))))
        b_fused = jnp.pad(b_fused, ((0, 0), (0, p - (k + b))))
    return {
        "w_fused": w_fused.astype(compute_dtype),   # (C, P)
        "b_fused": b_fused.astype(jnp.float32),     # (1, P)
        "k": k,
        "b": b,
        "p": p,
    }


def _vmem_bytes(tn, c, p, w_itemsize):
    # 2x-buffered f32 x tile + 2x-buffered f32 out tile
    # + single-buffered weight + bias.
    return (2 * tn * c * 4) + (2 * tn * p * 4) + (c * p * w_itemsize) + (p * 4)


def _choose_row_tile(n, c, p, w_itemsize):
    n_eff = max(int(n), 1)
    # Big tiles so per-step MXU work dominates the ~0.35 us pipeline overhead.
    tn = min(512, _round_up(n_eff, 8))
    # Keep >= 2 grid steps when there are enough rows, so the "parallel" axis
    # can shard across both TensorCores on 2-TC chips (v7x).
    if n_eff > 64 and pl.cdiv(n_eff, tn) < 2:
        tn = _round_up(pl.cdiv(n_eff, 2), 8)
    # Shrink if the VMEM budget would blow past ~48 MiB (v7x has 64 MiB).
    while tn > 8 and _vmem_bytes(tn, c, p, w_itemsize) > (48 << 20):
        tn = max(8, _round_up(tn // 2, 8))
    return tn


def box_predictor_forward(x, packed, num_classes, class_agnostic=False):
    """Pallas implementation of BoxPredictor.forward.

    `packed` is the output of prepack_box_predictor_params().
    Returns (scores, bbox_deltas) with the original module's semantics.
    """
    if x.ndim == 4:
        assert list(x.shape[2:]) == [1, 1]
    # torch: x = x.flatten(start_dim=1)
    x2d = x.reshape(x.shape[0], -1).astype(jnp.float32)
    n, c = x2d.shape

    w_fused = packed["w_fused"]
    b_fused = packed["b_fused"]
    k, b, p = packed["k"], packed["b"], packed["p"]
    assert w_fused.shape == (c, p)

    w_itemsize = jnp.dtype(w_fused.dtype).itemsize
    tn = _choose_row_tile(n, c, p, w_itemsize)
    grid = (pl.cdiv(n, tn),)   # ragged last tile handled by Pallas (masked store)

    vmem_need = _vmem_bytes(tn, c, p, w_itemsize) + (2 << 20)  # slack
    vmem_limit = int(min(max(vmem_need, 32 << 20), 64 << 20))

    flops = 2 * n * c * p
    bytes_accessed = (n * c * 4) + (c * p * w_itemsize) + (p * 4) + (n * p * 4)

    out = pl.pallas_call(
        _fused_linear_kernel,
        out_shape=jax.ShapeDtypeStruct((n, p), jnp.float32),
        grid=grid,
        in_specs=[
            # x: tiled over N, double-buffered/pipelined (f32; cast in-kernel).
            pl.BlockSpec((tn, c), lambda i: (i, 0)),
            # fused weight + bias: constant index map -> VMEM-resident, DMA'd
            # once; single-buffered to halve the resident footprint.
            pl.BlockSpec((c, p), lambda i: (0, 0), pipeline_mode=pl.Buffered(1)),
            pl.BlockSpec((1, p), lambda i: (0, 0), pipeline_mode=pl.Buffered(1)),
        ],
        out_specs=pl.BlockSpec((tn, p), lambda i: (i, 0)),
        compiler_params=pltpu.CompilerParams(
            dimension_semantics=("parallel",),   # shard N tiles across TCs
            vmem_limit_bytes=vmem_limit,
        ),
        cost_estimate=pl.CostEstimate(
            flops=flops, transcendentals=0, bytes_accessed=bytes_accessed
        ),
    )(x2d, w_fused, b_fused)

    # Column slices out of the fused lane-padded buffer (no row slicing needed).
    scores = out[:, :k]
    bbox_deltas = out[:, k:k + b]
    if class_agnostic:
        # torch: bbox_deltas.repeat([1, num_classes]) -- cheap glue, not hot path.
        bbox_deltas = jnp.tile(bbox_deltas, (1, num_classes))
    return scores, bbox_deltas


if __name__ == "__main__":
    key = jax.random.PRNGKey(0)
    kx, kx2, kp, kp2 = jax.random.split(key, 4)

    N, C, NUM_CLASSES = 4, 32, 5

    # 4D NCHW input with 1x1 spatial, as produced by the ROI head pooling.
    x = jax.random.normal(kx, (N, C, 1, 1), dtype=jnp.float32)
    x2d = x.reshape(N, -1)
    x2d_bf = x2d.astype(jnp.bfloat16)

    # --- class-specific (default) variant ---
    params = init_box_predictor_params(kp, C, NUM_CLASSES, class_agnostic=False)
    packed = prepack_box_predictor_params(params)
    scores, bbox = box_predictor_forward(x, packed, NUM_CLASSES, class_agnostic=False)
    jax.block_until_ready((scores, bbox))
    assert scores.shape == (N, NUM_CLASSES)
    assert bbox.shape == (N, NUM_CLASSES * 4)

    # Reference with the same bf16 streaming cast (f32 accumulation + f32 bias).
    ref_scores = (
        jnp.dot(x2d_bf, params["w_cls"].astype(jnp.bfloat16),
                preferred_element_type=jnp.float32) + params["b_cls"]
    )
    ref_bbox = (
        jnp.dot(x2d_bf, params["w_box"].astype(jnp.bfloat16),
                preferred_element_type=jnp.float32) + params["b_box"]
    )
    assert jnp.allclose(scores, ref_scores, atol=1e-4, rtol=1e-4)
    assert jnp.allclose(bbox, ref_bbox, atol=1e-4, rtol=1e-4)

    # Loose sanity check against the full-f32 reference (bf16 rounding budget).
    ref_scores_f32 = x2d @ params["w_cls"] + params["b_cls"]
    ref_bbox_f32 = x2d @ params["w_box"] + params["b_box"]
    assert jnp.allclose(scores, ref_scores_f32, atol=5e-2)
    assert jnp.allclose(bbox, ref_bbox_f32, atol=5e-2)

    # --- class-agnostic variant, ragged grid (N=20 -> multiple tiles, masked tail) ---
    N2 = 20
    x_a = jax.random.normal(kx2, (N2, C, 1, 1), dtype=jnp.float32)
    x2d_a = x_a.reshape(N2, -1)
    params_a = init_box_predictor_params(kp2, C, NUM_CLASSES, class_agnostic=True)
    packed_a = prepack_box_predictor_params(params_a)
    scores_a, bbox_a = box_predictor_forward(x_a, packed_a, NUM_CLASSES, class_agnostic=True)
    jax.block_until_ready((scores_a, bbox_a))
    assert scores_a.shape == (N2, NUM_CLASSES)
    assert bbox_a.shape == (N2, NUM_CLASSES * 4)
    x2d_a_bf = x2d_a.astype(jnp.bfloat16)
    ref_scores_a = (
        jnp.dot(x2d_a_bf, params_a["w_cls"].astype(jnp.bfloat16),
                preferred_element_type=jnp.float32) + params_a["b_cls"]
    )
    ref_bbox_a = jnp.tile(
        jnp.dot(x2d_a_bf, params_a["w_box"].astype(jnp.bfloat16),
                preferred_element_type=jnp.float32) + params_a["b_box"],
        (1, NUM_CLASSES),
    )
    assert jnp.allclose(scores_a, ref_scores_a, atol=1e-4, rtol=1e-4)
    assert jnp.allclose(bbox_a, ref_bbox_a, atol=1e-4, rtol=1e-4)

    print("KERNEL_OK")
</pallas_src>

<mosaic_0001>
module attributes {stable_mosaic.version = 11 : i64} {
  func.func @_fused_linear_kernel(%arg0: i32, %arg1: memref<8x32xf32, #tpu.memory_space<vmem>>, %arg2: memref<32x128xbf16, #tpu.memory_space<vmem>>, %arg3: memref<1x128xf32, #tpu.memory_space<vmem>>, %arg4: memref<8x128xf32, #tpu.memory_space<vmem>>) attributes {dimension_semantics = [#tpu.dimension_semantics<parallel>], iteration_bounds = array<i64: 1>, scalar_prefetch = 0 : i64, scratch_operands = 0 : i64, tpu.core_type = #tpu.core_type<tc>, window_params = [{transform_indices = @transform_0, window_bounds = array<i64: 8, 32>}, {pipeline_mode = #tpu.pipeline_mode<synchronous>, transform_indices = @transform_1, window_bounds = array<i64: 32, 128>}, {pipeline_mode = #tpu.pipeline_mode<synchronous>, transform_indices = @transform_2, window_bounds = array<i64: 1, 128>}, {transform_indices = @transform_3, window_bounds = array<i64: 8, 128>}]} {
    %c0 = arith.constant 0 : index
    %c0_0 = arith.constant 0 : index
    %0 = vector.load %arg1[%c0, %c0_0] : memref<8x32xf32, #tpu.memory_space<vmem>>, vector<8x32xf32>
    %1 = arith.truncf %0 : vector<8x32xf32> to vector<8x32xbf16>
    %c0_1 = arith.constant 0 : index
    %c0_2 = arith.constant 0 : index
    %2 = vector.load %arg2[%c0_1, %c0_2] : memref<32x128xbf16, #tpu.memory_space<vmem>>, vector<32x128xbf16>
    %cst = arith.constant dense<0.000000e+00> : vector<8x128xf32>
    %3 = tpu.matmul %1, %2, %cst {dimension_numbers = #tpu.dot_dimension_numbers<[1], [0], [0], [1], [0, 0, 1, 1], [], []>} : vector<8x32xbf16>, vector<32x128xbf16>, vector<8x128xf32> -> vector<8x128xf32>
    %c0_3 = arith.constant 0 : index
    %c0_4 = arith.constant 0 : index
    %4 = vector.load %arg3[%c0_3, %c0_4] : memref<1x128xf32, #tpu.memory_space<vmem>>, vector<1x128xf32>
    %5 = vector.broadcast %4 : vector<1x128xf32> to vector<8x128xf32>
    %6 = arith.addf %3, %5 : vector<8x128xf32>
    %c0_5 = arith.constant 0 : index
    %c0_6 = arith.constant 0 : index
    %7 = vector.load %arg4[%c0_5, %c0_6] : memref<8x128xf32, #tpu.memory_space<vmem>>, vector<8x128xf32>
    tpu.vector_store %arg4[%c0_5, %c0_6], %6 {strides = array<i32>} : memref<8x128xf32, #tpu.memory_space<vmem>>, vector<8x128xf32>,
    return
  }
  func.func @transform_0(%arg0: i32) -> (i32, i32) {
    %c0_i32 = arith.constant 0 : i32
    %c0_i32_0 = arith.constant 0 : i32
    return %arg0, %c0_i32 : i32, i32
  }
  func.func @transform_1(%arg0: i32) -> (i32, i32) {
    %c0_i32 = arith.constant 0 : i32
    %c0_i32_0 = arith.constant 0 : i32
    %c0_i32_1 = arith.constant 0 : i32
    return %c0_i32, %c0_i32_0 : i32, i32
  }
  func.func @transform_2(%arg0: i32) -> (i32, i32) {
    %c0_i32 = arith.constant 0 : i32
    %c0_i32_0 = arith.constant 0 : i32
    %c0_i32_1 = arith.constant 0 : i32
    return %c0_i32, %c0_i32_0 : i32, i32
  }
  func.func @transform_3(%arg0: i32) -> (i32, i32) {
    %c0_i32 = arith.constant 0 : i32
    %c0_i32_0 = arith.constant 0 : i32
    return %arg0, %c0_i32 : i32, i32
  }
}

</mosaic_0001>

<llo_original>
// kernel: tpu_custom_call.1
$region0: #{tpu_custom_call.1}
  #allocation0 [shape = 'u32[]', space=smem, size = 0x4, offset = 0x4, fixed_abs, tag = 'smem constant byte address 0x4 - core index']
  #allocation1 [shape = 'u32[144,128]{1,0:T(1,128)}', space=vmem, size = 0x12000, scoped, tag = 'internal scratch']
  %s0 = inlined_call_operand.hbm [shape: f32[4,32], index: 0, kind: input, shape index: {}]
  %s1 = inlined_call_operand.hbm [shape: bf16[32,128], index: 1, kind: input, shape index: {}]
  %s2 = inlined_call_operand.vmem [shape: f32[1,128], index: 2, kind: input, shape index: {}]
  %s3 = inlined_call_operand.hbm [shape: f32[4,128], index: 3, kind: output, shape index: {}]
  %s4 = sld [smem:[#allocation0]]
  $region30: #{tpu_custom_call.1} parent=0
    _
  %s6 = ssub.s32 1, %s4
  %s7 = scalar_select 0, %s6, %s4
  $region1: #{tpu_custom_call.1} parent=0
    #allocation2 [shape = 'u8[4096]{0}', space=vmem, size = 0x1000, scoped, tag = 'input window, operand 0, single buffered']
    #allocation3 [shape = 's32[1]{0}', space=sflag, size = 0x4, scoped, tag = 'scoped memory for tpu_custom_call.1']
    #allocation4 [shape = 's32[1]{0}', space=sflag, size = 0x4, scoped, tag = 'scoped memory for tpu_custom_call.1']
    #allocation5 [shape = 'u8[8192]{0}', space=vmem, size = 0x2000, scoped, tag = 'input window, operand 1, single buffered']
    #allocation6 [shape = 's32[1]{0}', space=sflag, size = 0x4, scoped, tag = 'scoped memory for tpu_custom_call.1']
    #allocation7 [shape = 'u8[4096]{0}', space=vmem, size = 0x1000, scoped, tag = 'output window, operand 0, single buffered']
    %8 = vsyncpa [#allocation3], 0
    %9 = vsyncpa [#allocation6], 0
    %10 = vsyncpa [#allocation4], 0
    // Predicated region
    $region2: #{tpu_custom_call.1} parent=1 // pred_check
      _
    $region3: #{tpu_custom_call.1} parent=1 // pred_check_branch
      %12 = sbr.rel (0) target = $region5
    $region4: #{tpu_custom_call.1} parent=1 // pred_region
      %s14 = ssub.s32 128, 64
      %15 = vsyncadd [#allocation3], %s14
      %s16 = sshll.u32 [#allocation2], 4
      %s17 = int_to_ptr.vmem [resolvable:$true] %s16
      %22 = dma.hbm_to_vmem [thread:$0]  %s0, 64, %s17, [#allocation3], 64, 64, 4
    $region5: #{tpu_custom_call.1} parent=1 // pred_fallthru
      _
    // Predicated region
    $region6: #{tpu_custom_call.1} parent=1 // pred_check
      _
    $region7: #{tpu_custom_call.1} parent=1 // pred_check_branch
      %24 = sbr.rel (0) target = $region9
    $region8: #{tpu_custom_call.1} parent=1 // pred_region
      %s26 = ssub.s32 256, 256
      %27 = vsyncadd [#allocation6], %s26
      %s28 = sshll.u32 [#allocation5], 4
      %s29 = int_to_ptr.vmem [resolvable:$true] %s28
      %34 = dma.hbm_to_vmem [thread:$0]  %s1, 256, %s29, [#allocation6], 64, 64, 4
    $region9: #{tpu_custom_call.1} parent=1 // pred_fallthru
      _
    // Predicated region
    $region10: #{tpu_custom_call.1} parent=1 // pred_check
      _
    $region11: #{tpu_custom_call.1} parent=1 // pred_check_branch
      %36 = sbr.rel (0) target = $region13
    $region12: #{tpu_custom_call.1} parent=1 // pred_region
      _
    $region13: #{tpu_custom_call.1} parent=1 // pred_fallthru
      _
    // Predicated region
    $region14: #{tpu_custom_call.1} parent=1 // pred_check
      _
    $region15: #{tpu_custom_call.1} parent=1 // pred_check_branch
      %38 = sbr.rel (0) target = $region17
    $region16: #{tpu_custom_call.1} parent=1 // pred_region
      %39 = dma.done [#allocation3], 128
    $region17: #{tpu_custom_call.1} parent=1 // pred_fallthru
      _
    // Predicated region
    $region18: #{tpu_custom_call.1} parent=1 // pred_check
      _
    $region19: #{tpu_custom_call.1} parent=1 // pred_check_branch
      %41 = sbr.rel (0) target = $region21
    $region20: #{tpu_custom_call.1} parent=1 // pred_region
      %42 = dma.done [#allocation6], 256
    $region21: #{tpu_custom_call.1} parent=1 // pred_fallthru
      _
    %v44 = vld [vmem:[#allocation2] sm:$0xff]
    %v45 = vpack.c.bf16 %v44, %v44
    %v46 = vld [vmem:[#allocation5] sm:$0xf]
    %v47 = vld [vmem:[#allocation5 + $0x4] sm:$0xf]
    %v48 = vld [vmem:[#allocation5 + $0x8] sm:$0xf]
    %v49 = vld [vmem:[#allocation5 + $0xc] sm:$0xf]
    %v50 = vld [vmem:[%s2] sm:$0x1]
    %v52 = vlaneseq
    %v53 = vshrl.u32 %v52, 7
    %v54 = vsub.s32 0, %v53
    %v55 = vrot.slane %v50, %v54
    %v61 = vunpack.c.l.b16 %v46
    %v62 = vunpack.c.l.b16 %v47
    %v63 = vunpack.c.l.b16 %v48
    %v64 = vunpack.c.l.b16 %v49
    %v65 = vpack.c.b16 %v62, %v61
    %v66 = vpack.c.b16 %v64, %v63
    %vm69 = vcmask 261120
    %v71 = vsel %vm69, %v45, 0
    %73 = vmatprep.subr.bf16.mxu0 0
    %74 = vmatpush1.bf16.msra.mxu0 0
    %75 = vmatprep.subr.bf16.mxu0 0
    %76 = vmatpush1.bf16.msra.mxu0 0
    %77 = vmatprep.subr.bf16.mxu0 0
    %78 = vmatpush1.bf16.msra.mxu0 0
    %79 = vmatprep.subr.bf16.mxu0 0
    %80 = vmatpush1.bf16.msra.mxu0 0
    %81 = vmatprep.subr.bf16.mxu0 0
    %82 = vmatpush1.bf16.msra.mxu0 0
    %83 = vmatprep.subr.bf16.mxu0 0
    %84 = vmatpush1.bf16.msra.mxu0 0
    %85 = vmatprep.subr.bf16.mxu0 0
    %86 = vmatpush1.bf16.msra.mxu0 %v66
    %87 = vmatprep.subr.bf16.mxu0 0
    %88 = vmatpush1.bf16.msra.mxu0 %v65
    %89 = vmatprep.subr.bf16.mxu0 0
    %90 = vmatpush2.bf16.msra.mxu0 0
    %91 = vmatprep.subr.bf16.mxu0 0
    %92 = vmatpush2.bf16.msra.mxu0 0
    %93 = vmatprep.subr.bf16.mxu0 0
    %94 = vmatpush2.bf16.msra.mxu0 0
    %95 = vmatprep.subr.bf16.mxu0 0
    %96 = vmatpush2.bf16.msra.mxu0 0
    %97 = vmatprep.subr.bf16.mxu0 0
    %98 = vmatpush2.bf16.msra.mxu0 0
    %99 = vmatprep.subr.bf16.mxu0 0
    %100 = vmatpush2.bf16.msra.mxu0 0
    %101 = vmatprep.subr.bf16.mxu0 0
    %102 = vmatpush2.bf16.msra.mxu0 0
    %103 = vmatprep.subr.bf16.mxu0 0
    %104 = vmatpush2.bf16.msra.mxu0 0
    %105 = vmatprep.mubr.bf16.mxu0 0
    %106 = vmatmul.mubr.bf16.gmra.mxu0 %v71
    %v107 = vpop.f32.mrf.mxu0
    %v108 = vadd.f32 %v55, %v107
    %v109 = vpop.f32.mrf.mxu0
    %v110 = vpop.f32.mrf.mxu0
    %v111 = vpop.f32.mrf.mxu0
    %112 = vdwg.mxu0
    %113 = vst [vmem:[#allocation7] sm:$0xff] %v108
    // Predicated region
    $region22: #{tpu_custom_call.1} parent=1 // pred_check
      _
    $region23: #{tpu_custom_call.1} parent=1 // pred_check_branch
      %115 = sbr.rel (0) target = $region25
    $region24: #{tpu_custom_call.1} parent=1 // pred_region
      %s117 = ssub.s32 128, 64
      %118 = vsyncadd [#allocation4], %s117
      %s119 = sshll.u32 [#allocation7], 4
      %s120 = int_to_ptr.vmem [resolvable:$true] %s119
      %125 = dma.vmem_to_hbm [thread:$0]  %s120, 64, %s3, [#allocation4], 64, 64, 4
    $region25: #{tpu_custom_call.1} parent=1 // pred_fallthru
      _
    // Predicated region
    $region26: #{tpu_custom_call.1} parent=1 // pred_check
      _
    $region27: #{tpu_custom_call.1} parent=1 // pred_check_branch
      %127 = sbr.rel (0) target = $region29
    $region28: #{tpu_custom_call.1} parent=1 // pred_region
      %128 = dma.done [#allocation4], 128
    $region29: #{tpu_custom_call.1} parent=1 // pred_fallthru
      _
    %129 = vsyncpa [#allocation3], 1
    %130 = vsyncpa [#allocation6], 1
    %131 = vsyncpa [#allocation4], 1

</llo_original>
